<compile_context>
chip_gen: v7x
topology: tpu7x:2x2x1
jax: 0.10.0
libtpu: 0.0.40
codegen_flags: <defaults>
</compile_context>

<pallas_src>
import functools

import jax
import jax.numpy as jnp
from jax.experimental import pallas as pl
from jax.experimental.pallas import tpu as pltpu


def _round_up(a, m):
    return ((a + m - 1) // m) * m


def _fused_vote_kernel(x_ref, w1_ref, b1_ref, w2_ref, b2_ref, out_ref,
                       *, num_members, cls_pad):
    # x_ref  : (tn, Dp)    f32  — one batch tile (streams over the grid)
    # w1_ref : (Dp, Hp)    bf16 — all members' first-layer weights, column-concat
    # b1_ref : (1, Hp)     f32
    # w2_ref : (Wout, Hp)  f32  — transposed block-diagonal second-layer weights
    # b2_ref : (Wout, 1)   f32  — padded class rows hold -inf
    # out_ref: (E, tn)     int32 — per-member votes for this batch tile
    x_bf = x_ref[...].astype(jnp.bfloat16)          # in-kernel cast (VPU, hidden under DMA)
    h = jnp.dot(x_bf, w1_ref[...],
                preferred_element_type=jnp.float32) + b1_ref[...]
    h = jnp.maximum(h, 0.0)                          # f32 elementwise (v5e VPU has no bf16)

    # logits_t = W2f @ h^T -> (Wout, tn): classes live on sublanes, batch on lanes.
    logits_t = jax.lax.dot_general(
        w2_ref[...], h,
        dimension_numbers=(((1,), (1,)), ((), ())),
        preferred_element_type=jnp.float32) + b2_ref[...]

    # Per-member argmax over its cp-sublane class group.  Padded rows are -inf so
    # they never win; first-maximum tie-break matches torch.argmax / jnp.argmax.
    # The sublane reduce leaves the vote lane-major, so the write to out_ref[e, :]
    # needs no relayout.
    for e in range(num_members):                     # static unroll; E is small
        grp = logits_t[e * cls_pad:(e + 1) * cls_pad, :]        # (cp, tn) aligned slice
        maxv = jnp.max(grp, axis=0, keepdims=True)              # (1, tn)
        ridx = jax.lax.broadcasted_iota(jnp.int32, grp.shape, 0)
        vote = jnp.min(jnp.where(grp == maxv, ridx, cls_pad), axis=0)  # (tn,) int32
        out_ref[e, :] = vote.astype(jnp.int32)


def voting_network_forward(x_nchw, w1, b1, w2, b2):
    """Ensemble voting forward.

    x_nchw: (N, C, H, W) float32.
    w1: (E, D, H), b1: (E, 1, H), w2: (E, H, C), b2: (E, 1, C).
    Returns votes (N, E) int32 (== torch.cat([argmax(n(x), 1, keepdim=True)], 1)).
    """
    n = x_nchw.shape[0]
    e, d, hid = w1.shape
    c = w2.shape[2]
    x2d = x_nchw.reshape(n, -1)                      # same as torch .view(N, -1)
    assert x2d.shape[1] == d

    dp = _round_up(d, 128)                           # lane-aligned contraction dim
    hp = _round_up(e * hid, 128)                     # fused hidden width (lane-aligned)
    cp = _round_up(c, 8)                             # per-member class stride (sublanes)
    wout = e * cp                                    # fused transposed-logits rows

    # --- fused weights (built once per call; no O(E) full-array .at[].set chain) ---
    # First layer: (D, E*H) column-concat, padded to (Dp, Hp), bf16 for the MXU.
    w1f = jnp.transpose(w1, (1, 0, 2)).reshape(d, e * hid)
    w1f = jnp.pad(w1f, ((0, dp - d), (0, hp - e * hid))).astype(jnp.bfloat16)
    b1f = jnp.pad(b1.reshape(1, e * hid), ((0, 0), (0, hp - e * hid)))

    # Second layer, transposed block-diagonal (Wout, Hp) via einsum-with-eye.
    w2t = jnp.pad(jnp.transpose(w2, (0, 2, 1)), ((0, 0), (0, cp - c), (0, 0)))  # (E, cp, H)
    eye = jnp.eye(e, dtype=w2.dtype)
    w2f = jnp.einsum('ekh,ef->ekfh', w2t, eye).reshape(e * cp, e * hid)
    w2f = jnp.pad(w2f, ((0, 0), (0, hp - e * hid)))
    # Bias: real classes keep their bias, padded class rows get -inf (never win).
    b2f = jnp.pad(b2.reshape(e, c), ((0, 0), (0, cp - c)),
                  constant_values=-jnp.inf).reshape(wout, 1)

    # --- batch tiling -----------------------------------------------------------
    if n >= 256:
        # >=2 tiles so the "parallel" axis can shard across v7x's two TensorCores;
        # cap at 1024 rows so f32 x tiles (x2 buffers) + weights fit v5e's 16 MiB
        # default scoped VMEM (v6e/v7x have more headroom).
        tn = min(1024, _round_up(pl.cdiv(n, 2), 128))
    else:
        tn = _round_up(n, 8)                          # single small tile
    n_pad = _round_up(n, tn)

    pad_rows, pad_cols = n_pad - n, dp - d
    if pad_rows or pad_cols:
        # Only copies x when the shape is not already aligned; x stays f32.
        x2d = jnp.pad(x2d, ((0, pad_rows), (0, pad_cols)))

    kernel = functools.partial(_fused_vote_kernel, num_members=e, cls_pad=cp)

    votes_en = pl.pallas_call(
        kernel,
        out_shape=jax.ShapeDtypeStruct((e, n_pad), jnp.int32),
        grid_spec=pltpu.PrefetchScalarGridSpec(
            num_scalar_prefetch=0,
            grid=(n_pad // tn,),
            in_specs=[
                pl.BlockSpec((tn, dp), lambda i: (i, 0)),      # x tile (streams, f32)
                pl.BlockSpec((dp, hp), lambda i: (0, 0)),      # fused W1 (resident)
                pl.BlockSpec((1, hp), lambda i: (0, 0)),       # fused b1
                pl.BlockSpec((wout, hp), lambda i: (0, 0)),    # transposed block-diag W2
                pl.BlockSpec((wout, 1), lambda i: (0, 0)),     # fused b2 (+pad=-inf)
            ],
            out_specs=pl.BlockSpec((e, tn), lambda i: (0, i)),  # lane-dense votes
        ),
        compiler_params=pltpu.CompilerParams(
            dimension_semantics=("parallel",),       # N tiles split across TCs (v7x)
        ),
    )(x2d, w1f, b1f, w2f, b2f)

    # (E, N_pad) -> (N, E), matching torch.cat([...], dim=1).
    return votes_en[:, :n].T


def _reference_forward(x_nchw, w1, b1, w2, b2):
    """Pure-JAX reference mirroring the kernel numerics (bf16 first layer)."""
    n = x_nchw.shape[0]
    x2d = x_nchw.reshape(n, -1)
    xb = x2d.astype(jnp.bfloat16)
    w1b = w1.astype(jnp.bfloat16)
    h = jnp.maximum(
        jnp.einsum('nd,edh->enh', xb, w1b, preferred_element_type=jnp.float32) + b1,
        0.0)
    logits = jnp.einsum('enh,ehc->enc', h, w2,
                        preferred_element_type=jnp.float32) + b2
    return jnp.argmax(logits, axis=2).astype(jnp.int32).T  # (N, E)


if __name__ == "__main__":
    # Small shapes consistent with the module's forward.
    N, C_in, H_sp, W_sp = 2, 4, 16, 16     # input NCHW
    D = C_in * H_sp * W_sp                 # 1024 flattened features
    HID = 32                               # hidden width of each member MLP
    NUM_CLASSES = 10                       # logits dim reduced by argmax
    E = 3                                  # number of ensemble members

    key = jax.random.PRNGKey(0)
    kx, k1, k2, k3, k4 = jax.random.split(key, 5)

    x = jax.random.normal(kx, (N, C_in, H_sp, W_sp), dtype=jnp.float32)
    w1 = jax.random.normal(k1, (E, D, HID), dtype=jnp.float32) * (1.0 / jnp.sqrt(D))
    b1 = jax.random.normal(k2, (E, 1, HID), dtype=jnp.float32) * 0.01
    w2 = jax.random.normal(k3, (E, HID, NUM_CLASSES), dtype=jnp.float32) * (1.0 / jnp.sqrt(HID))
    b2 = jax.random.normal(k4, (E, 1, NUM_CLASSES), dtype=jnp.float32) * 0.01

    votes = voting_network_forward(x, w1, b1, w2, b2)
    votes = jax.block_until_ready(votes)

    ref = _reference_forward(x, w1, b1, w2, b2)
    assert votes.shape == (N, E), votes.shape
    assert bool((votes == ref).all()), (votes, ref)

    print("KERNEL_OK")
</pallas_src>

<mosaic_0001>
module attributes {stable_mosaic.version = 11 : i64} {
  func.func @_fused_vote_kernel(%arg0: i32, %arg1: memref<8x1024xf32, #tpu.memory_space<vmem>>, %arg2: memref<1024x128xbf16, #tpu.memory_space<vmem>>, %arg3: memref<1x128xf32, #tpu.memory_space<vmem>>, %arg4: memref<48x128xf32, #tpu.memory_space<vmem>>, %arg5: memref<48x1xf32, #tpu.memory_space<vmem>>, %arg6: memref<3x8xi32, #tpu.memory_space<vmem>>) attributes {dimension_semantics = [#tpu.dimension_semantics<parallel>], iteration_bounds = array<i64: 1>, scalar_prefetch = 0 : i64, scratch_operands = 0 : i64, tpu.core_type = #tpu.core_type<tc>, window_params = [{transform_indices = @transform_0, window_bounds = array<i64: 8, 1024>}, {pipeline_mode = #tpu.pipeline_mode<synchronous>, transform_indices = @transform_1, window_bounds = array<i64: 1024, 128>}, {pipeline_mode = #tpu.pipeline_mode<synchronous>, transform_indices = @transform_2, window_bounds = array<i64: 1, 128>}, {pipeline_mode = #tpu.pipeline_mode<synchronous>, transform_indices = @transform_3, window_bounds = array<i64: 48, 128>}, {pipeline_mode = #tpu.pipeline_mode<synchronous>, transform_indices = @transform_4, window_bounds = array<i64: 48, 1>}, {transform_indices = @transform_5, window_bounds = array<i64: 3, 8>}]} {
    %c0 = arith.constant 0 : index
    %c0_0 = arith.constant 0 : index
    %0 = vector.load %arg1[%c0, %c0_0] : memref<8x1024xf32, #tpu.memory_space<vmem>>, vector<8x1024xf32>
    %1 = arith.truncf %0 : vector<8x1024xf32> to vector<8x1024xbf16>
    %c0_1 = arith.constant 0 : index
    %c0_2 = arith.constant 0 : index
    %2 = vector.load %arg2[%c0_1, %c0_2] : memref<1024x128xbf16, #tpu.memory_space<vmem>>, vector<1024x128xbf16>
    %cst = arith.constant dense<0.000000e+00> : vector<8x128xf32>
    %3 = tpu.matmul %1, %2, %cst {dimension_numbers = #tpu.dot_dimension_numbers<[1], [0], [0], [1], [0, 0, 1, 1], [], []>} : vector<8x1024xbf16>, vector<1024x128xbf16>, vector<8x128xf32> -> vector<8x128xf32>
    %c0_3 = arith.constant 0 : index
    %c0_4 = arith.constant 0 : index
    %4 = vector.load %arg3[%c0_3, %c0_4] : memref<1x128xf32, #tpu.memory_space<vmem>>, vector<1x128xf32>
    %5 = vector.broadcast %4 : vector<1x128xf32> to vector<8x128xf32>
    %6 = arith.addf %3, %5 : vector<8x128xf32>
    %cst_5 = arith.constant 0.000000e+00 : f32
    %7 = vector.broadcast %cst_5 : f32 to vector<8x128xf32>
    %8 = arith.maximumf %6, %7 : vector<8x128xf32>
    %c0_6 = arith.constant 0 : index
    %c0_7 = arith.constant 0 : index
    %9 = vector.load %arg4[%c0_6, %c0_7] : memref<48x128xf32, #tpu.memory_space<vmem>>, vector<48x128xf32>
    %cst_8 = arith.constant dense<0.000000e+00> : vector<48x8xf32>
    %10 = tpu.matmul %9, %8, %cst_8 {dimension_numbers = #tpu.dot_dimension_numbers<[1], [1], [0], [0], [0, 0, 1, 0], [], []>} : vector<48x128xf32>, vector<8x128xf32>, vector<48x8xf32> -> vector<48x8xf32>
    %c0_9 = arith.constant 0 : index
    %c0_10 = arith.constant 0 : index
    %11 = vector.load %arg5[%c0_9, %c0_10] : memref<48x1xf32, #tpu.memory_space<vmem>>, vector<48x1xf32>
    %12 = vector.broadcast %11 : vector<48x1xf32> to vector<48x8xf32>
    %13 = arith.addf %10, %12 : vector<48x8xf32>
    %14 = vector.extract_strided_slice %13 {offsets = [0, 0], sizes = [16, 8], strides = [1, 1]} : vector<48x8xf32> to vector<16x8xf32>
    %cst_11 = arith.constant dense<0xFF800000> : vector<8xf32>
    %15 = vector.multi_reduction <maximumf>, %14, %cst_11 [0] : vector<16x8xf32> to vector<8xf32>
    %16 = vector.shape_cast %15 : vector<8xf32> to vector<1x8xf32>
    %17 = tpu.iota {dimensions = array<i32: 0>} : vector<16x8xi32>
    %18 = vector.broadcast %16 : vector<1x8xf32> to vector<16x8xf32>
    %19 = arith.cmpf oeq, %14, %18 : vector<16x8xf32>
    %c16_i32 = arith.constant 16 : i32
    %20 = vector.broadcast %c16_i32 : i32 to vector<16x8xi32>
    %21 = arith.select %19, %17, %20 : vector<16x8xi1>, vector<16x8xi32>
    %cst_12 = arith.constant dense<2147483647> : vector<8xi32>
    %22 = vector.multi_reduction <minsi>, %21, %cst_12 [0] : vector<16x8xi32> to vector<8xi32>
    %c0_13 = arith.constant 0 : index
    %c0_14 = arith.constant 0 : index
    %23 = vector.load %arg6[%c0_13, %c0_14] : memref<3x8xi32, #tpu.memory_space<vmem>>, vector<1x8xi32>
    %24 = vector.shape_cast %23 : vector<1x8xi32> to vector<8xi32>
    %25 = vector.shape_cast %22 : vector<8xi32> to vector<1x8xi32>
    tpu.vector_store %arg6[%c0_13, %c0_14], %25 {strides = array<i32>} : memref<3x8xi32, #tpu.memory_space<vmem>>, vector<1x8xi32>,
    %26 = vector.extract_strided_slice %13 {offsets = [16, 0], sizes = [16, 8], strides = [1, 1]} : vector<48x8xf32> to vector<16x8xf32>
    %cst_15 = arith.constant dense<0xFF800000> : vector<8xf32>
    %27 = vector.multi_reduction <maximumf>, %26, %cst_15 [0] : vector<16x8xf32> to vector<8xf32>
    %28 = vector.shape_cast %27 : vector<8xf32> to vector<1x8xf32>
    %29 = tpu.iota {dimensions = array<i32: 0>} : vector<16x8xi32>
    %30 = vector.broadcast %28 : vector<1x8xf32> to vector<16x8xf32>
    %31 = arith.cmpf oeq, %26, %30 : vector<16x8xf32>
    %c16_i32_16 = arith.constant 16 : i32
    %32 = vector.broadcast %c16_i32_16 : i32 to vector<16x8xi32>
    %33 = arith.select %31, %29, %32 : vector<16x8xi1>, vector<16x8xi32>
    %cst_17 = arith.constant dense<2147483647> : vector<8xi32>
    %34 = vector.multi_reduction <minsi>, %33, %cst_17 [0] : vector<16x8xi32> to vector<8xi32>
    %c1 = arith.constant 1 : index
    %c0_18 = arith.constant 0 : index
    %35 = vector.load %arg6[%c1, %c0_18] : memref<3x8xi32, #tpu.memory_space<vmem>>, vector<1x8xi32>
    %36 = vector.shape_cast %35 : vector<1x8xi32> to vector<8xi32>
    %37 = vector.shape_cast %34 : vector<8xi32> to vector<1x8xi32>
    tpu.vector_store %arg6[%c1, %c0_18], %37 {strides = array<i32>} : memref<3x8xi32, #tpu.memory_space<vmem>>, vector<1x8xi32>,
    %38 = vector.extract_strided_slice %13 {offsets = [32, 0], sizes = [16, 8], strides = [1, 1]} : vector<48x8xf32> to vector<16x8xf32>
    %cst_19 = arith.constant dense<0xFF800000> : vector<8xf32>
    %39 = vector.multi_reduction <maximumf>, %38, %cst_19 [0] : vector<16x8xf32> to vector<8xf32>
    %40 = vector.shape_cast %39 : vector<8xf32> to vector<1x8xf32>
    %41 = tpu.iota {dimensions = array<i32: 0>} : vector<16x8xi32>
    %42 = vector.broadcast %40 : vector<1x8xf32> to vector<16x8xf32>
    %43 = arith.cmpf oeq, %38, %42 : vector<16x8xf32>
    %c16_i32_20 = arith.constant 16 : i32
    %44 = vector.broadcast %c16_i32_20 : i32 to vector<16x8xi32>
    %45 = arith.select %43, %41, %44 : vector<16x8xi1>, vector<16x8xi32>
    %cst_21 = arith.constant dense<2147483647> : vector<8xi32>
    %46 = vector.multi_reduction <minsi>, %45, %cst_21 [0] : vector<16x8xi32> to vector<8xi32>
    %c2 = arith.constant 2 : index
    %c0_22 = arith.constant 0 : index
    %47 = vector.load %arg6[%c2, %c0_22] : memref<3x8xi32, #tpu.memory_space<vmem>>, vector<1x8xi32>
    %48 = vector.shape_cast %47 : vector<1x8xi32> to vector<8xi32>
    %49 = vector.shape_cast %46 : vector<8xi32> to vector<1x8xi32>
    tpu.vector_store %arg6[%c2, %c0_22], %49 {strides = array<i32>} : memref<3x8xi32, #tpu.memory_space<vmem>>, vector<1x8xi32>,
    return
  }
  func.func @transform_0(%arg0: i32) -> (i32, i32) {
    %c0_i32 = arith.constant 0 : i32
    %c0_i32_0 = arith.constant 0 : i32
    return %arg0, %c0_i32 : i32, i32
  }
  func.func @transform_1(%arg0: i32) -> (i32, i32) {
    %c0_i32 = arith.constant 0 : i32
    %c0_i32_0 = arith.constant 0 : i32
    %c0_i32_1 = arith.constant 0 : i32
    return %c0_i32, %c0_i32_0 : i32, i32
  }
  func.func @transform_2(%arg0: i32) -> (i32, i32) {
    %c0_i32 = arith.constant 0 : i32
    %c0_i32_0 = arith.constant 0 : i32
    %c0_i32_1 = arith.constant 0 : i32
    return %c0_i32, %c0_i32_0 : i32, i32
  }
  func.func @transform_3(%arg0: i32) -> (i32, i32) {
    %c0_i32 = arith.constant 0 : i32
    %c0_i32_0 = arith.constant 0 : i32
    %c0_i32_1 = arith.constant 0 : i32
    return %c0_i32, %c0_i32_0 : i32, i32
  }
  func.func @transform_4(%arg0: i32) -> (i32, i32) {
    %c0_i32 = arith.constant 0 : i32
    %c0_i32_0 = arith.constant 0 : i32
    %c0_i32_1 = arith.constant 0 : i32
    return %c0_i32, %c0_i32_0 : i32, i32
  }
  func.func @transform_5(%arg0: i32) -> (i32, i32) {
    %c0_i32 = arith.constant 0 : i32
    %c0_i32_0 = arith.constant 0 : i32
    return %c0_i32, %arg0 : i32, i32
  }
}

</mosaic_0001>

<llo_original>
// kernel: tpu_custom_call.1
$region0: #{tpu_custom_call.1}
  #allocation0 [shape = 'u32[]', space=smem, size = 0x4, offset = 0x4, fixed_abs, tag = 'smem constant byte address 0x4 - core index']
  #allocation1 [shape = 'u32[144,128]{1,0:T(1,128)}', space=vmem, size = 0x12000, scoped, tag = 'internal scratch']
  %s0 = inlined_call_operand.hbm [shape: f32[8,1024], index: 0, kind: input, shape index: {}]
  %s1 = inlined_call_operand.hbm [shape: bf16[1024,128], index: 1, kind: input, shape index: {}]
  %s2 = inlined_call_operand.vmem [shape: f32[1,128], index: 2, kind: input, shape index: {}]
  %s3 = inlined_call_operand.vmem [shape: f32[48,128], index: 3, kind: input, shape index: {}]
  %s4 = inlined_call_operand.vmem [shape: f32[48,1], index: 4, kind: input, shape index: {}]
  %s5 = inlined_call_operand.hbm [shape: s32[3,8], index: 5, kind: output, shape index: {}]
  %s6 = sld [smem:[#allocation0]]
  $region38: #{tpu_custom_call.1} parent=0
    _
  %s8 = ssub.s32 1, %s6
  %s9 = scalar_select 0, %s8, %s6
  $region1: #{tpu_custom_call.1} parent=0
    #allocation2 [shape = 'u8[32768]{0}', space=vmem, size = 0x8000, scoped, tag = 'input window, operand 0, single buffered']
    #allocation3 [shape = 's32[1]{0}', space=sflag, size = 0x4, scoped, tag = 'scoped memory for tpu_custom_call.1']
    #allocation4 [shape = 's32[1]{0}', space=sflag, size = 0x4, scoped, tag = 'scoped memory for tpu_custom_call.1']
    #allocation5 [shape = 'u8[262144]{0}', space=vmem, size = 0x40000, scoped, tag = 'input window, operand 1, single buffered']
    #allocation6 [shape = 's32[1]{0}', space=sflag, size = 0x4, scoped, tag = 'scoped memory for tpu_custom_call.1']
    #allocation7 [shape = 'u8[2048]{0}', space=vmem, size = 0x800, scoped, tag = 'output window, operand 0, single buffered']
    %10 = vsyncpa [#allocation3], 0
    %11 = vsyncpa [#allocation6], 0
    %12 = vsyncpa [#allocation4], 0
    // Predicated region
    $region2: #{tpu_custom_call.1} parent=1 // pred_check
      _
    $region3: #{tpu_custom_call.1} parent=1 // pred_check_branch
      %14 = sbr.rel (0) target = $region5
    $region4: #{tpu_custom_call.1} parent=1 // pred_region
      %s16 = ssub.s32 1024, 1024
      %17 = vsyncadd [#allocation3], %s16
      %s19 = sshll.u32 [#allocation2], 4
      %s20 = int_to_ptr.vmem [resolvable:$true] %s19
      %22 = dma.hbm_to_vmem [thread:$0]  %s0, 1024, %s20, [#allocation3]
    $region5: #{tpu_custom_call.1} parent=1 // pred_fallthru
      _
    // Predicated region
    $region6: #{tpu_custom_call.1} parent=1 // pred_check
      _
    $region7: #{tpu_custom_call.1} parent=1 // pred_check_branch
      %24 = sbr.rel (0) target = $region9
    $region8: #{tpu_custom_call.1} parent=1 // pred_region
      %s26 = ssub.s32 8192, 8192
      %27 = vsyncadd [#allocation6], %s26
      %s28 = sshll.u32 [#allocation5], 4
      %s29 = int_to_ptr.vmem [resolvable:$true] %s28
      %34 = dma.hbm_to_vmem [thread:$0]  %s1, 8192, %s29, [#allocation6], 64, 64, 4
    $region9: #{tpu_custom_call.1} parent=1 // pred_fallthru
      _
    // Predicated region
    $region10: #{tpu_custom_call.1} parent=1 // pred_check
      _
    $region11: #{tpu_custom_call.1} parent=1 // pred_check_branch
      %36 = sbr.rel (0) target = $region13
    $region12: #{tpu_custom_call.1} parent=1 // pred_region
      _
    $region13: #{tpu_custom_call.1} parent=1 // pred_fallthru
      _
    // Predicated region
    $region14: #{tpu_custom_call.1} parent=1 // pred_check
      _
    $region15: #{tpu_custom_call.1} parent=1 // pred_check_branch
      %38 = sbr.rel (0) target = $region17
    $region16: #{tpu_custom_call.1} parent=1 // pred_region
      _
    $region17: #{tpu_custom_call.1} parent=1 // pred_fallthru
      _
    // Predicated region
    $region18: #{tpu_custom_call.1} parent=1 // pred_check
      _
    $region19: #{tpu_custom_call.1} parent=1 // pred_check_branch
      %40 = sbr.rel (0) target = $region21
    $region20: #{tpu_custom_call.1} parent=1 // pred_region
      _
    $region21: #{tpu_custom_call.1} parent=1 // pred_fallthru
      _
    // Predicated region
    $region22: #{tpu_custom_call.1} parent=1 // pred_check
      _
    $region23: #{tpu_custom_call.1} parent=1 // pred_check_branch
      %42 = sbr.rel (0) target = $region25
    $region24: #{tpu_custom_call.1} parent=1 // pred_region
      %43 = dma.done [#allocation3], 1024
    $region25: #{tpu_custom_call.1} parent=1 // pred_fallthru
      _
    // Predicated region
    $region26: #{tpu_custom_call.1} parent=1 // pred_check
      _
    $region27: #{tpu_custom_call.1} parent=1 // pred_check_branch
      %45 = sbr.rel (0) target = $region29
    $region28: #{tpu_custom_call.1} parent=1 // pred_region
      %46 = dma.done [#allocation6], 8192
    $region29: #{tpu_custom_call.1} parent=1 // pred_fallthru
      _
    %v48 = vld [vmem:[#allocation2] sm:$0xff]
    %v49 = vld [vmem:[#allocation2 + $0x8] sm:$0xff]
    %v50 = vld [vmem:[#allocation2 + $0x10] sm:$0xff]
    %v51 = vld [vmem:[#allocation2 + $0x18] sm:$0xff]
    %v52 = vld [vmem:[#allocation2 + $0x20] sm:$0xff]
    %v53 = vld [vmem:[#allocation2 + $0x28] sm:$0xff]
    %v54 = vld [vmem:[#allocation2 + $0x30] sm:$0xff]
    %v55 = vld [vmem:[#allocation2 + $0x38] sm:$0xff]
    %v56 = vpack.c.bf16 %v48, %v48
    %v57 = vpack.c.bf16 %v49, %v49
    %v58 = vpack.c.bf16 %v50, %v50
    %v59 = vpack.c.bf16 %v51, %v51
    %v60 = vpack.c.bf16 %v52, %v52
    %v61 = vpack.c.bf16 %v53, %v53
    %v62 = vpack.c.bf16 %v54, %v54
    %v63 = vpack.c.bf16 %v55, %v55
    %v64 = vld [vmem:[#allocation5] sm:$0xf]
    %v65 = vld [vmem:[#allocation5 + $0x4] sm:$0xf]
    %v66 = vld [vmem:[#allocation5 + $0x8] sm:$0xf]
    %v67 = vld [vmem:[#allocation5 + $0xc] sm:$0xf]
    %v68 = vld [vmem:[#allocation5 + $0x10] sm:$0xf]
    %v69 = vld [vmem:[#allocation5 + $0x14] sm:$0xf]
    %v70 = vld [vmem:[#allocation5 + $0x18] sm:$0xf]
    %v71 = vld [vmem:[#allocation5 + $0x1c] sm:$0xf]
    %v72 = vld [vmem:[#allocation5 + $0x20] sm:$0xf]
    %v73 = vld [vmem:[#allocation5 + $0x24] sm:$0xf]
    %v74 = vld [vmem:[#allocation5 + $0x28] sm:$0xf]
    %v75 = vld [vmem:[#allocation5 + $0x2c] sm:$0xf]
    %v76 = vld [vmem:[#allocation5 + $0x30] sm:$0xf]
    %v77 = vld [vmem:[#allocation5 + $0x34] sm:$0xf]
    %v78 = vld [vmem:[#allocation5 + $0x38] sm:$0xf]
    %v79 = vld [vmem:[#allocation5 + $0x3c] sm:$0xf]
    %v80 = vld [vmem:[#allocation5 + $0x40] sm:$0xf]
    %v81 = vld [vmem:[#allocation5 + $0x44] sm:$0xf]
    %v82 = vld [vmem:[#allocation5 + $0x48] sm:$0xf]
    %v83 = vld [vmem:[#allocation5 + $0x4c] sm:$0xf]
    %v84 = vld [vmem:[#allocation5 + $0x50] sm:$0xf]
    %v85 = vld [vmem:[#allocation5 + $0x54] sm:$0xf]
    %v86 = vld [vmem:[#allocation5 + $0x58] sm:$0xf]
    %v87 = vld [vmem:[#allocation5 + $0x5c] sm:$0xf]
    %v88 = vld [vmem:[#allocation5 + $0x60] sm:$0xf]
    %v89 = vld [vmem:[#allocation5 + $0x64] sm:$0xf]
    %v90 = vld [vmem:[#allocation5 + $0x68] sm:$0xf]
    %v91 = vld [vmem:[#allocation5 + $0x6c] sm:$0xf]
    %v92 = vld [vmem:[#allocation5 + $0x70] sm:$0xf]
    %v93 = vld [vmem:[#allocation5 + $0x74] sm:$0xf]
    %v94 = vld [vmem:[#allocation5 + $0x78] sm:$0xf]
    %v95 = vld [vmem:[#allocation5 + $0x7c] sm:$0xf]
    %v96 = vld [vmem:[#allocation5 + $0x80] sm:$0xf]
    %v97 = vld [vmem:[#allocation5 + $0x84] sm:$0xf]
    %v98 = vld [vmem:[#allocation5 + $0x88] sm:$0xf]
    %v99 = vld [vmem:[#allocation5 + $0x8c] sm:$0xf]
    %v100 = vld [vmem:[#allocation5 + $0x90] sm:$0xf]
    %v101 = vld [vmem:[#allocation5 + $0x94] sm:$0xf]
    %v102 = vld [vmem:[#allocation5 + $0x98] sm:$0xf]
    %v103 = vld [vmem:[#allocation5 + $0x9c] sm:$0xf]
    %v104 = vld [vmem:[#allocation5 + $0xa0] sm:$0xf]
    %v105 = vld [vmem:[#allocation5 + $0xa4] sm:$0xf]
    %v106 = vld [vmem:[#allocation5 + $0xa8] sm:$0xf]
    %v107 = vld [vmem:[#allocation5 + $0xac] sm:$0xf]
    %v108 = vld [vmem:[#allocation5 + $0xb0] sm:$0xf]
    %v109 = vld [vmem:[#allocation5 + $0xb4] sm:$0xf]
    %v110 = vld [vmem:[#allocation5 + $0xb8] sm:$0xf]
    %v111 = vld [vmem:[#allocation5 + $0xbc] sm:$0xf]
    %v112 = vld [vmem:[#allocation5 + $0xc0] sm:$0xf]
    %v113 = vld [vmem:[#allocation5 + $0xc4] sm:$0xf]
    %v114 = vld [vmem:[#allocation5 + $0xc8] sm:$0xf]
    %v115 = vld [vmem:[#allocation5 + $0xcc] sm:$0xf]
    %v116 = vld [vmem:[#allocation5 + $0xd0] sm:$0xf]
    %v117 = vld [vmem:[#allocation5 + $0xd4] sm:$0xf]
    %v118 = vld [vmem:[#allocation5 + $0xd8] sm:$0xf]
    %v119 = vld [vmem:[#allocation5 + $0xdc] sm:$0xf]
    %v120 = vld [vmem:[#allocation5 + $0xe0] sm:$0xf]
    %v121 = vld [vmem:[#allocation5 + $0xe4] sm:$0xf]
    %v122 = vld [vmem:[#allocation5 + $0xe8] sm:$0xf]
    %v123 = vld [vmem:[#allocation5 + $0xec] sm:$0xf]
    %v124 = vld [vmem:[#allocation5 + $0xf0] sm:$0xf]
    %v125 = vld [vmem:[#allocation5 + $0xf4] sm:$0xf]
    %v126 = vld [vmem:[#allocation5 + $0xf8] sm:$0xf]
    %v127 = vld [vmem:[#allocation5 + $0xfc] sm:$0xf]
    %v128 = vld [vmem:[#allocation5 + $0x100] sm:$0xf]
    %v129 = vld [vmem:[#allocation5 + $0x104] sm:$0xf]
    %v130 = vld [vmem:[#allocation5 + $0x108] sm:$0xf]
    %v131 = vld [vmem:[#allocation5 + $0x10c] sm:$0xf]
    %v132 = vld [vmem:[#allocation5 + $0x110] sm:$0xf]
    %v133 = vld [vmem:[#allocation5 + $0x114] sm:$0xf]
    %v134 = vld [vmem:[#allocation5 + $0x118] sm:$0xf]
    %v135 = vld [vmem:[#allocation5 + $0x11c] sm:$0xf]
    %v136 = vld [vmem:[#allocation5 + $0x120] sm:$0xf]
    %v137 = vld [vmem:[#allocation5 + $0x124] sm:$0xf]
    %v138 = vld [vmem:[#allocation5 + $0x128] sm:$0xf]
    %v139 = vld [vmem:[#allocation5 + $0x12c] sm:$0xf]
    %v140 = vld [vmem:[#allocation5 + $0x130] sm:$0xf]
    %v141 = vld [vmem:[#allocation5 + $0x134] sm:$0xf]
    %v142 = vld [vmem:[#allocation5 + $0x138] sm:$0xf]
    %v143 = vld [vmem:[#allocation5 + $0x13c] sm:$0xf]
    %v144 = vld [vmem:[#allocation5 + $0x140] sm:$0xf]
    %v145 = vld [vmem:[#allocation5 + $0x144] sm:$0xf]
    %v146 = vld [vmem:[#allocation5 + $0x148] sm:$0xf]
    %v147 = vld [vmem:[#allocation5 + $0x14c] sm:$0xf]
    %v148 = vld [vmem:[#allocation5 + $0x150] sm:$0xf]
    %v149 = vld [vmem:[#allocation5 + $0x154] sm:$0xf]
    %v150 = vld [vmem:[#allocation5 + $0x158] sm:$0xf]
    %v151 = vld [vmem:[#allocation5 + $0x15c] sm:$0xf]
    %v152 = vld [vmem:[#allocation5 + $0x160] sm:$0xf]
    %v153 = vld [vmem:[#allocation5 + $0x164] sm:$0xf]
    %v154 = vld [vmem:[#allocation5 + $0x168] sm:$0xf]
    %v155 = vld [vmem:[#allocation5 + $0x16c] sm:$0xf]
    %v156 = vld [vmem:[#allocation5 + $0x170] sm:$0xf]
    %v157 = vld [vmem:[#allocation5 + $0x174] sm:$0xf]
    %v158 = vld [vmem:[#allocation5 + $0x178] sm:$0xf]
    %v159 = vld [vmem:[#allocation5 + $0x17c] sm:$0xf]
    %v160 = vld [vmem:[#allocation5 + $0x180] sm:$0xf]
    %v161 = vld [vmem:[#allocation5 + $0x184] sm:$0xf]
    %v162 = vld [vmem:[#allocation5 + $0x188] sm:$0xf]
    %v163 = vld [vmem:[#allocation5 + $0x18c] sm:$0xf]
    %v164 = vld [vmem:[#allocation5 + $0x190] sm:$0xf]
    %v165 = vld [vmem:[#allocation5 + $0x194] sm:$0xf]
    %v166 = vld [vmem:[#allocation5 + $0x198] sm:$0xf]
    %v167 = vld [vmem:[#allocation5 + $0x19c] sm:$0xf]
    %v168 = vld [vmem:[#allocation5 + $0x1a0] sm:$0xf]
    %v169 = vld [vmem:[#allocation5 + $0x1a4] sm:$0xf]
    %v170 = vld [vmem:[#allocation5 + $0x1a8] sm:$0xf]
    %v171 = vld [vmem:[#allocation5 + $0x1ac] sm:$0xf]
    %v172 = vld [vmem:[#allocation5 + $0x1b0] sm:$0xf]
    %v173 = vld [vmem:[#allocation5 + $0x1b4] sm:$0xf]
    %v174 = vld [vmem:[#allocation5 + $0x1b8] sm:$0xf]
    %v175 = vld [vmem:[#allocation5 + $0x1bc] sm:$0xf]
    %v176 = vld [vmem:[#allocation5 + $0x1c0] sm:$0xf]
    %v177 = vld [vmem:[#allocation5 + $0x1c4] sm:$0xf]
    %v178 = vld [vmem:[#allocation5 + $0x1c8] sm:$0xf]
    %v179 = vld [vmem:[#allocation5 + $0x1cc] sm:$0xf]
    %v180 = vld [vmem:[#allocation5 + $0x1d0] sm:$0xf]
    %v181 = vld [vmem:[#allocation5 + $0x1d4] sm:$0xf]
    %v182 = vld [vmem:[#allocation5 + $0x1d8] sm:$0xf]
    %v183 = vld [vmem:[#allocation5 + $0x1dc] sm:$0xf]
    %v184 = vld [vmem:[#allocation5 + $0x1e0] sm:$0xf]
    %v185 = vld [vmem:[#allocation5 + $0x1e4] sm:$0xf]
    %v186 = vld [vmem:[#allocation5 + $0x1e8] sm:$0xf]
    %v187 = vld [vmem:[#allocation5 + $0x1ec] sm:$0xf]
    %v188 = vld [vmem:[#allocation5 + $0x1f0] sm:$0xf]
    %v189 = vld [vmem:[#allocation5 + $0x1f4] sm:$0xf]
    %v190 = vld [vmem:[#allocation5 + $0x1f8] sm:$0xf]
    %v191 = vld [vmem:[#allocation5 + $0x1fc] sm:$0xf]
    %v192 = vld [vmem:[%s2] sm:$0x1]
    %v194 = vlaneseq
    %v195 = vshrl.u32 %v194, 7
    %v196 = vsub.s32 0, %v195
    %v197 = vrot.slane %v192, %v196
    %v327 = vunpack.c.l.b16 %v64
    %v328 = vunpack.c.l.b16 %v65
    %v329 = vunpack.c.l.b16 %v66
    %v330 = vunpack.c.l.b16 %v67
    %v331 = vunpack.c.l.b16 %v68
    %v332 = vunpack.c.l.b16 %v69
    %v333 = vunpack.c.l.b16 %v70
    %v334 = vunpack.c.l.b16 %v71
    %v335 = vunpack.c.l.b16 %v72
    %v336 = vunpack.c.l.b16 %v73
    %v337 = vunpack.c.l.b16 %v74
    %v338 = vunpack.c.l.b16 %v75
    %v339 = vunpack.c.l.b16 %v76
    %v340 = vunpack.c.l.b16 %v77
    %v341 = vunpack.c.l.b16 %v78
    %v342 = vunpack.c.l.b16 %v79
    %v343 = vunpack.c.l.b16 %v80
    %v344 = vunpack.c.l.b16 %v81
    %v345 = vunpack.c.l.b16 %v82
    %v346 = vunpack.c.l.b16 %v83
    %v347 = vunpack.c.l.b16 %v84
    %v348 = vunpack.c.l.b16 %v85
    %v349 = vunpack.c.l.b16 %v86
    %v350 = vunpack.c.l.b16 %v87
    %v351 = vunpack.c.l.b16 %v88
    %v352 = vunpack.c.l.b16 %v89
    %v353 = vunpack.c.l.b16 %v90
    %v354 = vunpack.c.l.b16 %v91
    %v355 = vunpack.c.l.b16 %v92
    %v356 = vunpack.c.l.b16 %v93
    %v357 = vunpack.c.l.b16 %v94
    %v358 = vunpack.c.l.b16 %v95
    %v359 = vunpack.c.l.b16 %v96
    %v360 = vunpack.c.l.b16 %v97
    %v361 = vunpack.c.l.b16 %v98
    %v362 = vunpack.c.l.b16 %v99
    %v363 = vunpack.c.l.b16 %v100
    %v364 = vunpack.c.l.b16 %v101
    %v365 = vunpack.c.l.b16 %v102
    %v366 = vunpack.c.l.b16 %v103
    %v367 = vunpack.c.l.b16 %v104
    %v368 = vunpack.c.l.b16 %v105
    %v369 = vunpack.c.l.b16 %v106
    %v370 = vunpack.c.l.b16 %v107
    %v371 = vunpack.c.l.b16 %v108
    %v372 = vunpack.c.l.b16 %v109
    %v373 = vunpack.c.l.b16 %v110
    %v374 = vunpack.c.l.b16 %v111
    %v375 = vunpack.c.l.b16 %v112
    %v376 = vunpack.c.l.b16 %v113
    %v377 = vunpack.c.l.b16 %v114
    %v378 = vunpack.c.l.b16 %v115
    %v379 = vunpack.c.l.b16 %v116
    %v380 = vunpack.c.l.b16 %v117
    %v381 = vunpack.c.l.b16 %v118
    %v382 = vunpack.c.l.b16 %v119
    %v383 = vunpack.c.l.b16 %v120
    %v384 = vunpack.c.l.b16 %v121
    %v385 = vunpack.c.l.b16 %v122
    %v386 = vunpack.c.l.b16 %v123
    %v387 = vunpack.c.l.b16 %v124
    %v388 = vunpack.c.l.b16 %v125
    %v389 = vunpack.c.l.b16 %v126
    %v390 = vunpack.c.l.b16 %v127
    %v391 = vunpack.c.l.b16 %v128
    %v392 = vunpack.c.l.b16 %v129
    %v393 = vunpack.c.l.b16 %v130
    %v394 = vunpack.c.l.b16 %v131
    %v395 = vunpack.c.l.b16 %v132
    %v396 = vunpack.c.l.b16 %v133
    %v397 = vunpack.c.l.b16 %v134
    %v398 = vunpack.c.l.b16 %v135
    %v399 = vunpack.c.l.b16 %v136
    %v400 = vunpack.c.l.b16 %v137
    %v401 = vunpack.c.l.b16 %v138
    %v402 = vunpack.c.l.b16 %v139
    %v403 = vunpack.c.l.b16 %v140
    %v404 = vunpack.c.l.b16 %v141
    %v405 = vunpack.c.l.b16 %v142
    %v406 = vunpack.c.l.b16 %v143
    %v407 = vunpack.c.l.b16 %v144
    %v408 = vunpack.c.l.b16 %v145
    %v409 = vunpack.c.l.b16 %v146
    %v410 = vunpack.c.l.b16 %v147
    %v411 = vunpack.c.l.b16 %v148
    %v412 = vunpack.c.l.b16 %v149
    %v413 = vunpack.c.l.b16 %v150
    %v414 = vunpack.c.l.b16 %v151
    %v415 = vunpack.c.l.b16 %v152
    %v416 = vunpack.c.l.b16 %v153
    %v417 = vunpack.c.l.b16 %v154
    %v418 = vunpack.c.l.b16 %v155
    %v419 = vunpack.c.l.b16 %v156
    %v420 = vunpack.c.l.b16 %v157
    %v421 = vunpack.c.l.b16 %v158
    %v422 = vunpack.c.l.b16 %v159
    %v423 = vunpack.c.l.b16 %v160
    %v424 = vunpack.c.l.b16 %v161
    %v425 = vunpack.c.l.b16 %v162
    %v426 = vunpack.c.l.b16 %v163
    %v427 = vunpack.c.l.b16 %v164
    %v428 = vunpack.c.l.b16 %v165
    %v429 = vunpack.c.l.b16 %v166
    %v430 = vunpack.c.l.b16 %v167
    %v431 = vunpack.c.l.b16 %v168
    %v432 = vunpack.c.l.b16 %v169
    %v433 = vunpack.c.l.b16 %v170
    %v434 = vunpack.c.l.b16 %v171
    %v435 = vunpack.c.l.b16 %v172
    %v436 = vunpack.c.l.b16 %v173
    %v437 = vunpack.c.l.b16 %v174
    %v438 = vunpack.c.l.b16 %v175
    %v439 = vunpack.c.l.b16 %v176
    %v440 = vunpack.c.l.b16 %v177
    %v441 = vunpack.c.l.b16 %v178
    %v442 = vunpack.c.l.b16 %v179
    %v443 = vunpack.c.l.b16 %v180
    %v444 = vunpack.c.l.b16 %v181
    %v445 = vunpack.c.l.b16 %v182
    %v446 = vunpack.c.l.b16 %v183
    %v447 = vunpack.c.l.b16 %v184
    %v448 = vunpack.c.l.b16 %v185
    %v449 = vunpack.c.l.b16 %v186
    %v450 = vunpack.c.l.b16 %v187
    %v451 = vunpack.c.l.b16 %v188
    %v452 = vunpack.c.l.b16 %v189
    %v453 = vunpack.c.l.b16 %v190
    %v454 = vunpack.c.l.b16 %v191
    %v455 = vpack.c.b16 %v328, %v327
    %v456 = vpack.c.b16 %v330, %v329
    %v457 = vpack.c.b16 %v332, %v331
    %v458 = vpack.c.b16 %v334, %v333
    %v459 = vpack.c.b16 %v336, %v335
    %v460 = vpack.c.b16 %v338, %v337
    %v461 = vpack.c.b16 %v340, %v339
    %v462 = vpack.c.b16 %v342, %v341
    %v463 = vpack.c.b16 %v344, %v343
    %v464 = vpack.c.b16 %v346, %v345
    %v465 = vpack.c.b16 %v348, %v347
    %v466 = vpack.c.b16 %v350, %v349
    %v467 = vpack.c.b16 %v352, %v351
    %v468 = vpack.c.b16 %v354, %v353
    %v469 = vpack.c.b16 %v356, %v355
    %v470 = vpack.c.b16 %v358, %v357
    %v471 = vpack.c.b16 %v360, %v359
    %v472 = vpack.c.b16 %v362, %v361
    %v473 = vpack.c.b16 %v364, %v363
    %v474 = vpack.c.b16 %v366, %v365
    %v475 = vpack.c.b16 %v368, %v367
    %v476 = vpack.c.b16 %v370, %v369
    %v477 = vpack.c.b16 %v372, %v371
    %v478 = vpack.c.b16 %v374, %v373
    %v479 = vpack.c.b16 %v376, %v375
    %v480 = vpack.c.b16 %v378, %v377
    %v481 = vpack.c.b16 %v380, %v379
    %v482 = vpack.c.b16 %v382, %v381
    %v483 = vpack.c.b16 %v384, %v383
    %v484 = vpack.c.b16 %v386, %v385
    %v485 = vpack.c.b16 %v388, %v387
    %v486 = vpack.c.b16 %v390, %v389
    %v487 = vpack.c.b16 %v392, %v391
    %v488 = vpack.c.b16 %v394, %v393
    %v489 = vpack.c.b16 %v396, %v395
    %v490 = vpack.c.b16 %v398, %v397
    %v491 = vpack.c.b16 %v400, %v399
    %v492 = vpack.c.b16 %v402, %v401
    %v493 = vpack.c.b16 %v404, %v403
    %v494 = vpack.c.b16 %v406, %v405
    %v495 = vpack.c.b16 %v408, %v407
    %v496 = vpack.c.b16 %v410, %v409
    %v497 = vpack.c.b16 %v412, %v411
    %v498 = vpack.c.b16 %v414, %v413
    %v499 = vpack.c.b16 %v416, %v415
    %v500 = vpack.c.b16 %v418, %v417
    %v501 = vpack.c.b16 %v420, %v419
    %v502 = vpack.c.b16 %v422, %v421
    %v503 = vpack.c.b16 %v424, %v423
    %v504 = vpack.c.b16 %v426, %v425
    %v505 = vpack.c.b16 %v428, %v427
    %v506 = vpack.c.b16 %v430, %v429
    %v507 = vpack.c.b16 %v432, %v431
    %v508 = vpack.c.b16 %v434, %v433
    %v509 = vpack.c.b16 %v436, %v435
    %v510 = vpack.c.b16 %v438, %v437
    %v511 = vpack.c.b16 %v440, %v439
    %v512 = vpack.c.b16 %v442, %v441
    %v513 = vpack.c.b16 %v444, %v443
    %v514 = vpack.c.b16 %v446, %v445
    %v515 = vpack.c.b16 %v448, %v447
    %v516 = vpack.c.b16 %v450, %v449
    %v517 = vpack.c.b16 %v452, %v451
    %v518 = vpack.c.b16 %v454, %v453
    %583 = vmatprep.subr.bf16.mxu0 0
    %584 = vmatpush1.bf16.msra.mxu0 %v455
    %585 = vmatprep.subr.bf16.mxu0 0
    %586 = vmatpush1.bf16.msra.mxu0 %v456
    %587 = vmatprep.subr.bf16.mxu0 0
    %588 = vmatpush1.bf16.msra.mxu0 %v457
    %589 = vmatprep.subr.bf16.mxu0 0
    %590 = vmatpush1.bf16.msra.mxu0 %v458
    %591 = vmatprep.subr.bf16.mxu0 0
    %592 = vmatpush1.bf16.msra.mxu0 %v459
    %593 = vmatprep.subr.bf16.mxu0 0
    %594 = vmatpush1.bf16.msra.mxu0 %v460
    %595 = vmatprep.subr.bf16.mxu0 0
    %596 = vmatpush1.bf16.msra.mxu0 %v461
    %597 = vmatprep.subr.bf16.mxu0 0
    %598 = vmatpush1.bf16.msra.mxu0 %v462
    %599 = vmatprep.subr.bf16.mxu0 0
    %600 = vmatpush1.bf16.msra.mxu0 %v463
    %601 = vmatprep.subr.bf16.mxu0 0
    %602 = vmatpush1.bf16.msra.mxu0 %v464
    %603 = vmatprep.subr.bf16.mxu0 0
    %604 = vmatpush1.bf16.msra.mxu0 %v465
    %605 = vmatprep.subr.bf16.mxu0 0
    %606 = vmatpush1.bf16.msra.mxu0 %v466
    %607 = vmatprep.subr.bf16.mxu0 0
    %608 = vmatpush1.bf16.msra.mxu0 %v467
    %609 = vmatprep.subr.bf16.mxu0 0
    %610 = vmatpush1.bf16.msra.mxu0 %v468
    %611 = vmatprep.subr.bf16.mxu0 0
    %612 = vmatpush1.bf16.msra.mxu0 %v469
    %613 = vmatprep.subr.bf16.mxu0 0
    %614 = vmatpush1.bf16.msra.mxu0 %v470
    %615 = vmatprep.mubr.bf16.mxu0 %v57
    %616 = vmatmul.mubr.bf16.gmra.mrb[0].mxu0 %v56
    %v617 = vpop.f32.mrb[0].mxu0
    %v618 = vadd.f32 %v197, %v617
    %v619 = vpop.f32.mrb[0].mxu0
    %v620 = vpop.f32.mrb[0].mxu0
    %v621 = vpop.f32.mrb[0].mxu0
    %622 = vdwg.mxu0
    %623 = vmatprep.subr.bf16.mxu0 0
    %624 = vmatpush1.bf16.msra.mxu0 %v471
    %625 = vmatprep.subr.bf16.mxu0 0
    %626 = vmatpush1.bf16.msra.mxu0 %v472
    %627 = vmatprep.subr.bf16.mxu0 0
    %628 = vmatpush1.bf16.msra.mxu0 %v473
    %629 = vmatprep.subr.bf16.mxu0 0
    %630 = vmatpush1.bf16.msra.mxu0 %v474
    %631 = vmatprep.subr.bf16.mxu0 0
    %632 = vmatpush1.bf16.msra.mxu0 %v475
    %633 = vmatprep.subr.bf16.mxu0 0
    %634 = vmatpush1.bf16.msra.mxu0 %v476
    %635 = vmatprep.subr.bf16.mxu0 0
    %636 = vmatpush1.bf16.msra.mxu0 %v477
    %637 = vmatprep.subr.bf16.mxu0 0
    %638 = vmatpush1.bf16.msra.mxu0 %v478
    %639 = vmatprep.subr.bf16.mxu0 0
    %640 = vmatpush1.bf16.msra.mxu0 %v479
    %641 = vmatprep.subr.bf16.mxu0 0
    %642 = vmatpush1.bf16.msra.mxu0 %v480
    %643 = vmatprep.subr.bf16.mxu0 0
    %644 = vmatpush1.bf16.msra.mxu0 %v481
    %645 = vmatprep.subr.bf16.mxu0 0
    %646 = vmatpush1.bf16.msra.mxu0 %v482
    %647 = vmatprep.subr.bf16.mxu0 0
    %648 = vmatpush1.bf16.msra.mxu0 %v483
    %649 = vmatprep.subr.bf16.mxu0 0
    %650 = vmatpush1.bf16.msra.mxu0 %v484
    %651 = vmatprep.subr.bf16.mxu0 0
    %652 = vmatpush1.bf16.msra.mxu0 %v485
    %653 = vmatprep.subr.bf16.mxu0 0
    %654 = vmatpush1.bf16.msra.mxu0 %v486
    %655 = vmatprep.mubr.bf16.mxu0 %v59
    %656 = vmatmul.mubr.bf16.gmra.mrb[0].mxu0 %v58
    %v657 = vpop.f32.mrb[0].mxu0
    %v658 = vadd.f32 %v618, %v657
    %v659 = vpop.f32.mrb[0].mxu0
    %v660 = vpop.f32.mrb[0].mxu0
    %v661 = vpop.f32.mrb[0].mxu0
    %662 = vdwg.mxu0
    %663 = vmatprep.subr.bf16.mxu0 0
    %664 = vmatpush1.bf16.msra.mxu0 %v487
    %665 = vmatprep.subr.bf16.mxu0 0
    %666 = vmatpush1.bf16.msra.mxu0 %v488
    %667 = vmatprep.subr.bf16.mxu0 0
    %668 = vmatpush1.bf16.msra.mxu0 %v489
    %669 = vmatprep.subr.bf16.mxu0 0
    %670 = vmatpush1.bf16.msra.mxu0 %v490
    %671 = vmatprep.subr.bf16.mxu0 0
    %672 = vmatpush1.bf16.msra.mxu0 %v491
    %673 = vmatprep.subr.bf16.mxu0 0
    %674 = vmatpush1.bf16.msra.mxu0 %v492
    %675 = vmatprep.subr.bf16.mxu0 0
    %676 = vmatpush1.bf16.msra.mxu0 %v493
    %677 = vmatprep.subr.bf16.mxu0 0
    %678 = vmatpush1.bf16.msra.mxu0 %v494
    %679 = vmatprep.subr.bf16.mxu0 0
    %680 = vmatpush1.bf16.msra.mxu0 %v495
    %681 = vmatprep.subr.bf16.mxu0 0
    %682 = vmatpush1.bf16.msra.mxu0 %v496
    %683 = vmatprep.subr.bf16.mxu0 0
    %684 = vmatpush1.bf16.msra.mxu0 %v497
    %685 = vmatprep.subr.bf16.mxu0 0
    %686 = vmatpush1.bf16.msra.mxu0 %v498
    %687 = vmatprep.subr.bf16.mxu0 0
    %688 = vmatpush1.bf16.msra.mxu0 %v499
    %689 = vmatprep.subr.bf16.mxu0 0
    %690 = vmatpush1.bf16.msra.mxu0 %v500
    %691 = vmatprep.subr.bf16.mxu0 0
    %692 = vmatpush1.bf16.msra.mxu0 %v501
    %693 = vmatprep.subr.bf16.mxu0 0
    %694 = vmatpush1.bf16.msra.mxu0 %v502
    %695 = vmatprep.mubr.bf16.mxu0 %v61
    %696 = vmatmul.mubr.bf16.gmra.mrb[0].mxu0 %v60
    %v697 = vpop.f32.mrb[0].mxu0
    %v698 = vadd.f32 %v658, %v697
    %v699 = vpop.f32.mrb[0].mxu0
    %v700 = vpop.f32.mrb[0].mxu0
    %v701 = vpop.f32.mrb[0].mxu0
    %702 = vdwg.mxu0
    %703 = vmatprep.subr.bf16.mxu0 0
    %704 = vmatpush1.bf16.msra.mxu0 %v503
    %705 = vmatprep.subr.bf16.mxu0 0
    %706 = vmatpush1.bf16.msra.mxu0 %v504
    %707 = vmatprep.subr.bf16.mxu0 0
    %708 = vmatpush1.bf16.msra.mxu0 %v505
    %709 = vmatprep.subr.bf16.mxu0 0
    %710 = vmatpush1.bf16.msra.mxu0 %v506
    %711 = vmatprep.subr.bf16.mxu0 0
    %712 = vmatpush1.bf16.msra.mxu0 %v507
    %713 = vmatprep.subr.bf16.mxu0 0
    %714 = vmatpush1.bf16.msra.mxu0 %v508
    %715 = vmatprep.subr.bf16.mxu0 0
    %716 = vmatpush1.bf16.msra.mxu0 %v509
    %717 = vmatprep.subr.bf16.mxu0 0
    %718 = vmatpush1.bf16.msra.mxu0 %v510
    %719 = vmatprep.subr.bf16.mxu0 0
    %720 = vmatpush1.bf16.msra.mxu0 %v511
    %721 = vmatprep.subr.bf16.mxu0 0
    %722 = vmatpush1.bf16.msra.mxu0 %v512
    %723 = vmatprep.subr.bf16.mxu0 0
    %724 = vmatpush1.bf16.msra.mxu0 %v513
    %725 = vmatprep.subr.bf16.mxu0 0
    %726 = vmatpush1.bf16.msra.mxu0 %v514
    %727 = vmatprep.subr.bf16.mxu0 0
    %728 = vmatpush1.bf16.msra.mxu0 %v515
    %729 = vmatprep.subr.bf16.mxu0 0
    %730 = vmatpush1.bf16.msra.mxu0 %v516
    %731 = vmatprep.subr.bf16.mxu0 0
    %732 = vmatpush1.bf16.msra.mxu0 %v517
    %733 = vmatprep.subr.bf16.mxu0 0
    %734 = vmatpush1.bf16.msra.mxu0 %v518
    %735 = vmatprep.mubr.bf16.mxu0 %v63
    %736 = vmatmul.mubr.bf16.gmra.mrb[0].mxu0 %v62
    %v737 = vpop.f32.mrb[0].mxu0
    %v738 = vadd.f32 %v698, %v737
    %v739 = vpop.f32.mrb[0].mxu0
    %v740 = vpop.f32.mrb[0].mxu0
    %v741 = vpop.f32.mrb[0].mxu0
    %742 = vdwg.mxu0
    %v743 = vmax.f32 %v738, 0.0
    %v744 = vld [vmem:[%s3] sm:$0xff]
    %v745 = vld [vmem:[%s3 + $0x8] sm:$0xff]
    %v746 = vld [vmem:[%s3 + $0x10] sm:$0xff]
    %v747 = vld [vmem:[%s3 + $0x18] sm:$0xff]
    %v748 = vld [vmem:[%s3 + $0x20] sm:$0xff]
    %v749 = vld [vmem:[%s3 + $0x28] sm:$0xff]
    %v750 = vld [vmem:[%s4] sm:$0xff]
    %v751 = vld [vmem:[%s4 + $0x8] sm:$0xff]
    %v752 = vld [vmem:[%s4 + $0x10] sm:$0xff]
    %v753 = vld [vmem:[%s4 + $0x18] sm:$0xff]
    %v754 = vld [vmem:[%s4 + $0x20] sm:$0xff]
    %v755 = vld [vmem:[%s4 + $0x28] sm:$0xff]
    %757 = vset.pattern.permute.xlu0 0
    %758 = vperm.xlu0 %757, %v750
    %v759 = vpop.permute.xlu0 %758
    %762 = vset.pattern.permute.xlu0 0
    %763 = vperm.xlu0 %762, %v751
    %v764 = vpop.permute.xlu0 %763
    %767 = vset.pattern.permute.xlu0 0
    %768 = vperm.xlu0 %767, %v752
    %v769 = vpop.permute.xlu0 %768
    %772 = vset.pattern.permute.xlu0 0
    %773 = vperm.xlu0 %772, %v753
    %v774 = vpop.permute.xlu0 %773
    %777 = vset.pattern.permute.xlu0 0
    %778 = vperm.xlu0 %777, %v754
    %v779 = vpop.permute.xlu0 %778
    %782 = vset.pattern.permute.xlu0 0
    %783 = vperm.xlu0 %782, %v755
    %v784 = vpop.permute.xlu0 %783
    %786 = vmatprep.subr.mxu0 0.0
    %787 = vmatpush1.xpose.msra.mxu0 %v743
    %788 = vmatprep.subr.mxu0 0.0
    %789 = vmatpush1.xpose.msra.mxu0 0.0
    %790 = vmatprep.subr.mxu0 0.0
    %791 = vmatpush1.xpose.msra.mxu0 0.0
    %792 = vmatprep.subr.mxu0 0.0
    %793 = vmatpush1.xpose.msra.mxu0 0.0
    %794 = vmatprep.subr.mxu0 0.0
    %795 = vmatpush1.xpose.msra.mxu0 0.0
    %796 = vmatprep.subr.mxu0 0.0
    %797 = vmatpush1.xpose.msra.mxu0 0.0
    %798 = vmatprep.subr.mxu0 0.0
    %799 = vmatpush1.xpose.msra.mxu0 0.0
    %800 = vmatprep.subr.mxu0 0.0
    %801 = vmatpush1.xpose.msra.mxu0 0.0
    %802 = vmatprep.subr.mxu0 0.0
    %803 = vmatpush1.xpose.msra.mxu0 0.0
    %804 = vmatprep.subr.mxu0 0.0
    %805 = vmatpush1.xpose.msra.mxu0 0.0
    %806 = vmatprep.subr.mxu0 0.0
    %807 = vmatpush1.xpose.msra.mxu0 0.0
    %808 = vmatprep.subr.mxu0 0.0
    %809 = vmatpush1.xpose.msra.mxu0 0.0
    %810 = vmatprep.subr.mxu0 0.0
    %811 = vmatpush1.xpose.msra.mxu0 0.0
    %812 = vmatprep.subr.mxu0 0.0
    %813 = vmatpush1.xpose.msra.mxu0 0.0
    %814 = vmatprep.subr.mxu0 0.0
    %815 = vmatpush1.xpose.msra.mxu0 0.0
    %816 = vmatprep.subr.mxu0 0.0
    %817 = vmatpush1.xpose.msra.mxu0 0.0
    %818 = vmatprep.subr.mxu0 0.0
    %819 = vmatpush1.xpose.msra.mxu0 0.0
    %820 = vmatprep.subr.mxu0 0.0
    %821 = vmatpush1.xpose.msra.mxu0 0.0
    %822 = vmatprep.subr.mxu0 0.0
    %823 = vmatpush1.xpose.msra.mxu0 0.0
    %824 = vmatprep.subr.mxu0 0.0
    %825 = vmatpush1.xpose.msra.mxu0 0.0
    %826 = vmatprep.subr.mxu0 0.0
    %827 = vmatpush1.xpose.msra.mxu0 0.0
    %828 = vmatprep.subr.mxu0 0.0
    %829 = vmatpush1.xpose.msra.mxu0 0.0
    %830 = vmatprep.subr.mxu0 0.0
    %831 = vmatpush1.xpose.msra.mxu0 0.0
    %832 = vmatprep.subr.mxu0 0.0
    %833 = vmatpush1.xpose.msra.mxu0 0.0
    %834 = vmatprep.subr.mxu0 0.0
    %835 = vmatpush1.xpose.msra.mxu0 0.0
    %836 = vmatprep.subr.mxu0 0.0
    %837 = vmatpush1.xpose.msra.mxu0 0.0
    %838 = vmatprep.subr.mxu0 0.0
    %839 = vmatpush1.xpose.msra.mxu0 0.0
    %840 = vmatprep.subr.mxu0 0.0
    %841 = vmatpush1.xpose.msra.mxu0 0.0
    %842 = vmatprep.subr.mxu0 0.0
    %843 = vmatpush1.xpose.msra.mxu0 0.0
    %844 = vmatprep.subr.mxu0 0.0
    %845 = vmatpush1.xpose.msra.mxu0 0.0
    %846 = vmatprep.subr.mxu0 0.0
    %847 = vmatpush1.xpose.msra.mxu0 0.0
    %848 = vmatprep.subr.mxu0 0.0
    %849 = vmatpush1.xpose.msra.mxu0 0.0
    %850 = vmatprep.mubr.f32.mxu0 0.0
    %851 = vmatmul.mubr.f32.gmra.mrb[0].mxu0 %v744
    %v852 = vpop.f32.mrb[0].mxu0
    %v853 = vadd.f32 %v759, %v852
    %v854 = vpop.f32.mrb[0].mxu0
    %855 = vmatprep.mubr.f32.mxu0 0.0
    %856 = vmatmul.mubr.f32.gmra.mrb[0].mxu0 %v745
    %v857 = vpop.f32.mrb[0].mxu0
    %v858 = vadd.f32 %v764, %v857
    %v859 = vpop.f32.mrb[0].mxu0
    %860 = vmatprep.mubr.f32.mxu0 0.0
    %861 = vmatmul.mubr.f32.gmra.mrb[0].mxu0 %v746
    %v862 = vpop.f32.mrb[0].mxu0
    %v863 = vadd.f32 %v769, %v862
    %v864 = vpop.f32.mrb[0].mxu0
    %865 = vmatprep.mubr.f32.mxu0 0.0
    %866 = vmatmul.mubr.f32.gmra.mrb[0].mxu0 %v747
    %v867 = vpop.f32.mrb[0].mxu0
    %v868 = vadd.f32 %v774, %v867
    %v869 = vpop.f32.mrb[0].mxu0
    %870 = vmatprep.mubr.f32.mxu0 0.0
    %871 = vmatmul.mubr.f32.gmra.mrb[0].mxu0 %v748
    %v872 = vpop.f32.mrb[0].mxu0
    %v873 = vadd.f32 %v779, %v872
    %v874 = vpop.f32.mrb[0].mxu0
    %875 = vmatprep.mubr.f32.mxu0 0.0
    %876 = vmatmul.mubr.f32.gmra.mrb[0].mxu0 %v749
    %v877 = vpop.f32.mrb[0].mxu0
    %v878 = vadd.f32 %v784, %v877
    %v879 = vpop.f32.mrb[0].mxu0
    %880 = vdwg.mxu0
    %vm881 = vcmask 64512
    %v882 = vsel %vm881, %v853, -inf
    %v883 = vsel %vm881, %v858, -inf
    %v884 = vmax.f32 %v882, %v883
    %v885 = vrot.slane %v884, 4
    %v886 = vmax.f32 %v884, %v885
    %v887 = vrot.slane %v886, 2
    %v888 = vmax.f32 %v886, %v887
    %v889 = vrot.slane %v888, 1
    %v890 = vmax.f32 %v888, %v889
    %v891 = vlaneseq
    %v892 = vshrl.u32 %v891, 7
    %v893 = vadd.s32 %v892, 8
    %vm894 = vcmp.eq.f32.partialorder %v853, %v890
    %vm895 = vcmp.eq.f32.partialorder %v858, %v890
    %v896 = vsel %vm894, %v892, 16
    %v897 = vsel %vm895, %v893, 16
    %v898 = vsel %vm881, %v896, 2147483647
    %v899 = vsel %vm881, %v897, 2147483647
    %vm900 = vcmp.lt.s32.totalorder %v898, %v899
    %v901 = vsel %vm900, %v898, %v899
    %v902 = vrot.slane %v901, 4
    %vm903 = vcmp.lt.s32.totalorder %v901, %v902
    %v904 = vsel %vm903, %v901, %v902
    %v905 = vrot.slane %v904, 2
    %vm906 = vcmp.lt.s32.totalorder %v904, %v905
    %v907 = vsel %vm906, %v904, %v905
    %v908 = vrot.slane %v907, 1
    %vm909 = vcmp.lt.s32.totalorder %v907, %v908
    %v910 = vsel %vm909, %v907, %v908
    %vm911 = vcmask 57344
    %912 = vst.msk [vmem:[#allocation7] sm:$0x1] %vm911, %v910
    %v913 = vsel %vm881, %v863, -inf
    %v914 = vsel %vm881, %v868, -inf
    %v915 = vmax.f32 %v913, %v914
    %v916 = vrot.slane %v915, 4
    %v917 = vmax.f32 %v915, %v916
    %v918 = vrot.slane %v917, 2
    %v919 = vmax.f32 %v917, %v918
    %v920 = vrot.slane %v919, 1
    %v921 = vmax.f32 %v919, %v920
    %vm922 = vcmp.eq.f32.partialorder %v863, %v921
    %vm923 = vcmp.eq.f32.partialorder %v868, %v921
    %v924 = vsel %vm922, %v892, 16
    %v925 = vsel %vm923, %v893, 16
    %v926 = vsel %vm881, %v924, 2147483647
    %v927 = vsel %vm881, %v925, 2147483647
    %vm928 = vcmp.lt.s32.totalorder %v926, %v927
    %v929 = vsel %vm928, %v926, %v927
    %v930 = vrot.slane %v929, 4
    %vm931 = vcmp.lt.s32.totalorder %v929, %v930
    %v932 = vsel %vm931, %v929, %v930
    %v933 = vrot.slane %v932, 2
    %vm934 = vcmp.lt.s32.totalorder %v932, %v933
    %v935 = vsel %vm934, %v932, %v933
    %v936 = vrot.slane %v935, 1
    %vm937 = vcmp.lt.s32.totalorder %v935, %v936
    %v938 = vsel %vm937, %v935, %v936
    %939 = vst.msk [vmem:[#allocation7 + $0x1] sm:$0x1] %vm911, %v938
    %v940 = vsel %vm881, %v873, -inf
    %v941 = vsel %vm881, %v878, -inf
    %v942 = vmax.f32 %v940, %v941
    %v943 = vrot.slane %v942, 4
    %v944 = vmax.f32 %v942, %v943
    %v945 = vrot.slane %v944, 2
    %v946 = vmax.f32 %v944, %v945
    %v947 = vrot.slane %v946, 1
    %v948 = vmax.f32 %v946, %v947
    %vm949 = vcmp.eq.f32.partialorder %v873, %v948
    %vm950 = vcmp.eq.f32.partialorder %v878, %v948
    %v951 = vsel %vm949, %v892, 16
    %v952 = vsel %vm950, %v893, 16
    %v953 = vsel %vm881, %v951, 2147483647
    %v954 = vsel %vm881, %v952, 2147483647
    %vm955 = vcmp.lt.s32.totalorder %v953, %v954
    %v956 = vsel %vm955, %v953, %v954
    %v957 = vrot.slane %v956, 4
    %vm958 = vcmp.lt.s32.totalorder %v956, %v957
    %v959 = vsel %vm958, %v956, %v957
    %v960 = vrot.slane %v959, 2
    %vm961 = vcmp.lt.s32.totalorder %v959, %v960
    %v962 = vsel %vm961, %v959, %v960
    %v963 = vrot.slane %v962, 1
    %vm964 = vcmp.lt.s32.totalorder %v962, %v963
    %v965 = vsel %vm964, %v962, %v963
    %966 = vst.msk [vmem:[#allocation7 + $0x2] sm:$0x1] %vm911, %v965
    // Predicated region
    $region30: #{tpu_custom_call.1} parent=1 // pred_check
      _
    $region31: #{tpu_custom_call.1} parent=1 // pred_check_branch
      %968 = sbr.rel (0) target = $region33
    $region32: #{tpu_custom_call.1} parent=1 // pred_region
      %s970 = ssub.s32 64, 64
      %971 = vsyncadd [#allocation4], %s970
      %s973 = sshll.u32 [#allocation7], 4
      %s974 = int_to_ptr.vmem [resolvable:$true] %s973
      %976 = dma.vmem_to_hbm [thread:$0]  %s974, 64, %s5, [#allocation4]
    $region33: #{tpu_custom_call.1} parent=1 // pred_fallthru
      _
    // Predicated region
    $region34: #{tpu_custom_call.1} parent=1 // pred_check
      _
    $region35: #{tpu_custom_call.1} parent=1 // pred_check_branch
      %978 = sbr.rel (0) target = $region37
    $region36: #{tpu_custom_call.1} parent=1 // pred_region
      %979 = dma.done [#allocation4], 64
    $region37: #{tpu_custom_call.1} parent=1 // pred_fallthru
      _
    %980 = vsyncpa [#allocation3], 1
    %981 = vsyncpa [#allocation6], 1
    %982 = vsyncpa [#allocation4], 1

</llo_original>
